<compile_context>
chip_gen: v7x
topology: tpu7x:2x2x1
jax: 0.10.0
libtpu: 0.0.40
codegen_flags: <defaults>
</compile_context>

<pallas_src>
import jax
import jax.numpy as jnp
from jax.experimental import pallas as pl
from jax.experimental.pallas import tpu as pltpu


def _norm_kernel(x_ref, o_ref):
    x = x_ref[...]                                      # (TC, HW), float32
    n = x.shape[1]
    mean = jnp.mean(x, axis=1, keepdims=True)           # (TC, 1)
    diff = x - mean
    # unbiased variance (ddof=1) to match torch.std default
    var = jnp.sum(diff * diff, axis=1, keepdims=True) * (1.0 / (n - 1))
    std = jnp.sqrt(var)
    # per-channel reciprocal on a (TC, 1) column, then a full-tile multiply
    scale = pl.reciprocal(std + 1e-7, approx=False)     # (TC, 1)
    o_ref[...] = diff * scale


def _pick_channel_tile(c, hw, max_tc=256, block_bytes_target=2 << 20):
    """Channel tile: multiple of 8, one (TC, HW) f32 block ~<= 2 MiB."""
    rows_budget = max(8, block_bytes_target // (hw * 4))
    tc = min(max_tc, rows_budget)
    tc = max(8, (tc // 8) * 8)
    if c <= tc:
        # a single block spanning the full channel dim is always legal,
        # even when C is not a multiple of 8 (full-dim block)
        tc = c
    return tc


def norm_layer(x, *, max_tc=256):
    """x: (1, C, H, W) float32 -> (1, C, H, W) float32."""
    b, c, h, w = x.shape
    assert b == 1
    hw = h * w
    assert hw > 1, "normLayer needs more than one spatial element (ddof=1 std)"

    x2d = x.reshape(c, hw)
    tc = _pick_channel_tile(c, hw, max_tc=max_tc)
    grid = (pl.cdiv(c, tc),)

    out2d = pl.pallas_call(
        _norm_kernel,
        out_shape=jax.ShapeDtypeStruct((c, hw), x2d.dtype),
        grid=grid,
        in_specs=[pl.BlockSpec((tc, hw), lambda i: (i, 0))],
        out_specs=pl.BlockSpec((tc, hw), lambda i: (i, 0)),
        compiler_params=pltpu.CompilerParams(
            dimension_semantics=("parallel",),
        ),
    )(x2d)

    # TODO(synk): for very large H*W (a single channel row exceeding the VMEM
    # budget) a two-phase sum / apply structure would be needed; not required
    # at these shapes.
    return out2d.reshape(1, c, h, w)


def _ref_norm_layer(x):
    # pure-JAX reference mirroring the PyTorch module
    b, c, h, w = x.shape
    xf = x.reshape(c, -1)
    mean = xf.mean(-1)
    std = jnp.sqrt(((xf - mean[:, None]) ** 2).sum(-1) / (xf.shape[-1] - 1))
    y = x - mean.reshape(1, c, 1, 1)
    y = y / (std + 1e-7).reshape(1, c, 1, 1)
    return y


if __name__ == "__main__":
    key = jax.random.PRNGKey(0)

    # 1) shape implied by the module's forward (b must be 1)
    x = jax.random.normal(key, (1, 4, 16, 16), dtype=jnp.float32)
    out = jax.block_until_ready(norm_layer(x))
    ref = _ref_norm_layer(x)
    assert out.shape == (1, 4, 16, 16)
    assert jnp.allclose(out, ref, atol=1e-5, rtol=1e-5)

    # 2) exercise the tiled multi-block path (grid > 1, partial last block)
    key2 = jax.random.PRNGKey(0)
    x2 = 3.0 + 2.0 * jax.random.normal(key2, (1, 40, 16, 16), dtype=jnp.float32)
    out2 = jax.block_until_ready(norm_layer(x2, max_tc=16))  # grid = cdiv(40,16)=3
    ref2 = _ref_norm_layer(x2)
    assert jnp.allclose(out2, ref2, atol=1e-5, rtol=1e-5)

    print("KERNEL_OK")
</pallas_src>

<mosaic_0001>
module attributes {stable_mosaic.version = 11 : i64} {
  func.func @_norm_kernel(%arg0: i32, %arg1: memref<4x256xf32, #tpu.memory_space<vmem>>, %arg2: memref<4x256xf32, #tpu.memory_space<vmem>>) attributes {dimension_semantics = [#tpu.dimension_semantics<parallel>], iteration_bounds = array<i64: 1>, scalar_prefetch = 0 : i64, scratch_operands = 0 : i64, tpu.core_type = #tpu.core_type<tc>, window_params = [{transform_indices = @transform_0, window_bounds = array<i64: 4, 256>}, {transform_indices = @transform_1, window_bounds = array<i64: 4, 256>}]} {
    %c0 = arith.constant 0 : index
    %c0_0 = arith.constant 0 : index
    %0 = vector.load %arg1[%c0, %c0_0] : memref<4x256xf32, #tpu.memory_space<vmem>>, vector<4x256xf32>
    %cst = arith.constant dense<0.000000e+00> : vector<4xf32>
    %1 = vector.multi_reduction <add>, %0, %cst [1] : vector<4x256xf32> to vector<4xf32>
    %2 = vector.shape_cast %1 : vector<4xf32> to vector<4x1xf32>
    %cst_1 = arith.constant 2.560000e+02 : f32
    %3 = vector.broadcast %cst_1 : f32 to vector<4x1xf32>
    %4 = arith.divf %2, %3 : vector<4x1xf32>
    %5 = vector.broadcast %4 : vector<4x1xf32> to vector<4x256xf32>
    %6 = arith.subf %0, %5 : vector<4x256xf32>
    %7 = arith.mulf %6, %6 : vector<4x256xf32>
    %cst_2 = arith.constant dense<0.000000e+00> : vector<4xf32>
    %8 = vector.multi_reduction <add>, %7, %cst_2 [1] : vector<4x256xf32> to vector<4xf32>
    %9 = vector.shape_cast %8 : vector<4xf32> to vector<4x1xf32>
    %cst_3 = arith.constant 0.00392156886 : f32
    %10 = vector.broadcast %cst_3 : f32 to vector<4x1xf32>
    %11 = arith.mulf %9, %10 : vector<4x1xf32>
    %12 = math.sqrt %11 : vector<4x1xf32>
    %cst_4 = arith.constant 1.000000e-07 : f32
    %13 = vector.broadcast %cst_4 : f32 to vector<4x1xf32>
    %14 = arith.addf %12, %13 : vector<4x1xf32>
    %15 = tpu.reciprocal %14 : vector<4x1xf32> -> vector<4x1xf32>
    %16 = vector.broadcast %15 : vector<4x1xf32> to vector<4x256xf32>
    %17 = arith.mulf %6, %16 : vector<4x256xf32>
    %c0_5 = arith.constant 0 : index
    %c0_6 = arith.constant 0 : index
    %18 = vector.load %arg2[%c0_5, %c0_6] : memref<4x256xf32, #tpu.memory_space<vmem>>, vector<4x256xf32>
    tpu.vector_store %arg2[%c0_5, %c0_6], %17 {strides = array<i32>} : memref<4x256xf32, #tpu.memory_space<vmem>>, vector<4x256xf32>,
    return
  }
  func.func @transform_0(%arg0: i32) -> (i32, i32) {
    %c0_i32 = arith.constant 0 : i32
    %c0_i32_0 = arith.constant 0 : i32
    return %arg0, %c0_i32 : i32, i32
  }
  func.func @transform_1(%arg0: i32) -> (i32, i32) {
    %c0_i32 = arith.constant 0 : i32
    %c0_i32_0 = arith.constant 0 : i32
    return %arg0, %c0_i32 : i32, i32
  }
}

</mosaic_0001>

<llo_original>
// kernel: tpu_custom_call.1
$region0: #{tpu_custom_call.1}
  #allocation0 [shape = 'u32[]', space=smem, size = 0x4, offset = 0x4, fixed_abs, tag = 'smem constant byte address 0x4 - core index']
  #allocation1 [shape = 'u32[144,128]{1,0:T(1,128)}', space=vmem, size = 0x12000, scoped, tag = 'internal scratch']
  %s0 = inlined_call_operand.hbm [shape: f32[4,256], index: 0, kind: input, shape index: {}]
  %s1 = inlined_call_operand.hbm [shape: f32[4,256], index: 1, kind: output, shape index: {}]
  %s2 = sld [smem:[#allocation0]]
  $region18: #{tpu_custom_call.1} parent=0
    _
  %s4 = ssub.s32 1, %s2
  %s5 = scalar_select 0, %s4, %s2
  $region1: #{tpu_custom_call.1} parent=0
    #allocation2 [shape = 'u8[4096]{0}', space=vmem, size = 0x1000, scoped, tag = 'input window, operand 0, single buffered']
    #allocation3 [shape = 's32[1]{0}', space=sflag, size = 0x4, scoped, tag = 'scoped memory for tpu_custom_call.1']
    #allocation4 [shape = 's32[1]{0}', space=sflag, size = 0x4, scoped, tag = 'scoped memory for tpu_custom_call.1']
    #allocation5 [shape = 'u8[4096]{0}', space=vmem, size = 0x1000, scoped, tag = 'output window, operand 0, single buffered']
    %6 = vsyncpa [#allocation3], 0
    %7 = vsyncpa [#allocation4], 0
    // Predicated region
    $region2: #{tpu_custom_call.1} parent=1 // pred_check
      _
    $region3: #{tpu_custom_call.1} parent=1 // pred_check_branch
      %9 = sbr.rel (0) target = $region5
    $region4: #{tpu_custom_call.1} parent=1 // pred_region
      %s11 = ssub.s32 128, 128
      %12 = vsyncadd [#allocation3], %s11
      %s14 = sshll.u32 [#allocation2], 4
      %s15 = int_to_ptr.vmem [resolvable:$true] %s14
      %17 = dma.hbm_to_vmem [thread:$0]  %s0, 128, %s15, [#allocation3]
    $region5: #{tpu_custom_call.1} parent=1 // pred_fallthru
      _
    // Predicated region
    $region6: #{tpu_custom_call.1} parent=1 // pred_check
      _
    $region7: #{tpu_custom_call.1} parent=1 // pred_check_branch
      %19 = sbr.rel (0) target = $region9
    $region8: #{tpu_custom_call.1} parent=1 // pred_region
      %20 = dma.done [#allocation3], 128
    $region9: #{tpu_custom_call.1} parent=1 // pred_fallthru
      _
    %v21 = vld [vmem:[#allocation2] sm:$0xff]
    %v23 = vcombine.high %v21, %v21
    %vm25 = vcmask 1043456
    %v26 = vsel %vm25, %v21, 0.0
    %v27 = vsel %vm25, %v23, 0.0
    %v28 = vadd.f32 %v26, %v27
    %29 = vadd.xlane.f32.xlu0 %v28
    %v30 = vpop.xlane.xlu0 %29
    %v31 = vrcp.pop 256.0
    %v32 = vmul.f32 %v30, %v31
    %v35 = vunpack.c.l.s4 839922192
    %v36 = vunpack.c.0.s8 %v35
    %v37 = vlaneseq
    %v38 = vshrl.u32 %v37, 7
    %v39 = vsub.s32 %v36, %v38
    %v40 = vrot.slane %v32, %v39
    %v42 = vsub.f32 %v21, %v40
    %v43 = vmul.f32 %v42, %v42
    %v45 = vcombine.high %v43, %v43
    %v47 = vsel %vm25, %v43, 0.0
    %v48 = vsel %vm25, %v45, 0.0
    %v49 = vadd.f32 %v47, %v48
    %50 = vadd.xlane.f32.xlu0 %v49
    %v51 = vpop.xlane.xlu0 %50
    %v52 = vmul.f32 %v51, 0.003921569
    %v53 = vrsqrt.pop %v52
    %v54 = vmul.f32 %v52, %v53
    %vm55 = vcmp.eq.f32.partialorder %v52, inf
    %v56 = vsel %vm55, %v52, %v54
    %vm57 = vcmp.eq.f32.partialorder %v52, 0.0
    %v58 = vand.u32 %v52, 2147483648
    %v59 = vsel %vm57, %v58, %v56
    %v60 = vadd.f32 %v59, 1e-07
    %v61 = vrcp.pop %v60
    %v64 = vunpack.c.l.s4 839922192
    %v65 = vunpack.c.0.s8 %v64
    %v66 = vlaneseq
    %v67 = vshrl.u32 %v66, 7
    %v68 = vsub.s32 %v65, %v67
    %v69 = vrot.slane %v61, %v68
    %v71 = vmul.f32 %v42, %v69
    %72 = vst [vmem:[#allocation5] sm:$0xff] %v71
    // Predicated region
    $region10: #{tpu_custom_call.1} parent=1 // pred_check
      _
    $region11: #{tpu_custom_call.1} parent=1 // pred_check_branch
      %74 = sbr.rel (0) target = $region13
    $region12: #{tpu_custom_call.1} parent=1 // pred_region
      %s76 = ssub.s32 128, 128
      %77 = vsyncadd [#allocation4], %s76
      %s79 = sshll.u32 [#allocation5], 4
      %s80 = int_to_ptr.vmem [resolvable:$true] %s79
      %82 = dma.vmem_to_hbm [thread:$0]  %s80, 128, %s1, [#allocation4]
    $region13: #{tpu_custom_call.1} parent=1 // pred_fallthru
      _
    // Predicated region
    $region14: #{tpu_custom_call.1} parent=1 // pred_check
      _
    $region15: #{tpu_custom_call.1} parent=1 // pred_check_branch
      %84 = sbr.rel (0) target = $region17
    $region16: #{tpu_custom_call.1} parent=1 // pred_region
      %85 = dma.done [#allocation4], 128
    $region17: #{tpu_custom_call.1} parent=1 // pred_fallthru
      _
    %86 = vsyncpa [#allocation3], 1
    %87 = vsyncpa [#allocation4], 1

</llo_original>
